<compile_context>
chip_gen: v7x
topology: tpu7x:2x2x1
jax: 0.10.0
libtpu: 0.0.40
codegen_flags: <defaults>
</compile_context>

<pallas_src>
import jax
import jax.numpy as jnp
from jax import lax
from jax.experimental import pallas as pl
from jax.experimental.pallas import tpu as pltpu


# ----------------------------------------------------------------------------
# Kernel
# ----------------------------------------------------------------------------
def _adapter_kernel(x_ref, w1_ref, w2_ref, o_ref):
    """x block (bn, c_in) -> out block (bn, c_in).

    Weights stay in PyTorch layout (hidden, c_in) / (c_in, hidden); both
    dot_generals contract the LAST dim of each operand, so the wrapper never
    does an HBM weight transpose.  Accumulation and both ReLUs are f32.
    """
    x = x_ref[...]                                             # (bn, c_in)
    h = lax.dot_general(x, w1_ref[...],                        # (bn, hidden)
                        (((1,), (1,)), ((), ())),
                        preferred_element_type=jnp.float32)
    h = jnp.maximum(h, 0.0)                                    # ReLU #1 (f32)
    y = lax.dot_general(h.astype(w2_ref.dtype), w2_ref[...],   # (bn, c_in)
                        (((1,), (1,)), ((), ())),
                        preferred_element_type=jnp.float32)
    o_ref[...] = jnp.maximum(y, 0.0).astype(o_ref.dtype)       # ReLU #2


# ----------------------------------------------------------------------------
# Tiling helpers
# ----------------------------------------------------------------------------
def _cdiv(a, b):
    return -(-a // b)


def _round_up(a, b):
    return _cdiv(a, b) * b


def _vmem_capacity_bytes():
    """Physical VMEM per TensorCore; conservative v7x fallback if unknown."""
    try:
        info = pltpu.get_tpu_info()
        for attr in ("vmem_capacity_bytes", "vmem_bytes", "vmem_size_bytes"):
            v = getattr(info, attr, None)
            if v:
                return int(v)
    except Exception:
        pass
    return 64 * 2**20


def _pick_block_rows(n, c_in, hidden, itemsize, out_itemsize, vmem_budget,
                     *, align=8, target=1024):
    """Pick the row tile bn and return (bn, estimated VMEM footprint)."""

    def footprint(b):
        io = 2 * b * c_in * (itemsize + out_itemsize)  # x + o tiles, double-buffered
        w = 2 * 2 * c_in * hidden * itemsize           # both weights, double-buffered
        tmp = 2 * b * (c_in + hidden) * 4              # f32 intermediates headroom
        return io + w + tmp

    if n <= align:
        return max(n, 1), footprint(max(n, 1))

    # Largest aligned tile <= target that fits the budget.
    bn = max(align, min(_round_up(n, align), _round_up(max(target, align), align)))
    while bn > align and footprint(bn) > vmem_budget:
        bn = max(align, _round_up(bn // 2, align))

    # Grid-step floor: >=2 steps so the x/o DMAs pipeline with compute;
    # >=4 steps when there is enough work that both v7x cores get >=2 each.
    want = 2
    if n >= 4 * 512:
        want = 4
    steps = _cdiv(n, bn)
    if steps < want and n >= want * align:
        bn = max(align, _round_up(_cdiv(n, want), align))
        steps = _cdiv(n, bn)

    # Balance the remainder so the tail step isn't mostly padded DMA/MXU work.
    bn = max(align, _round_up(_cdiv(n, steps), align))
    if bn >= n:
        bn = n                                         # full-extent block is legal
    return bn, footprint(max(bn, align))


# ----------------------------------------------------------------------------
# Wrapper
# ----------------------------------------------------------------------------
def adapter_forward(x, w1, w2, *, block_rows=1024, compute_dtype=None):
    """Fused Adapter forward: y = ReLU(ReLU(x @ W1.T) @ W2.T).

    x : (..., c_in)        (nn.Linear acts on the last dim)
    w1: (hidden, c_in)     PyTorch nn.Linear weight layout
    w2: (c_in, hidden)

    compute_dtype: stream x / w1 / w2 in this dtype (e.g. jnp.bfloat16 on
    v6e/v7x).  Only a bandwidth win when the activations already arrive in that
    dtype (or the cast fuses into the producer); accumulation, ReLUs and the
    returned dtype stay at the caller's original precision.
    """
    orig_dtype = x.dtype
    *lead, c_in = x.shape
    hidden = w1.shape[0]
    assert w1.shape == (hidden, c_in) and w2.shape == (c_in, hidden)

    if compute_dtype is not None:
        x = x.astype(compute_dtype)
        w1 = w1.astype(compute_dtype)
        w2 = w2.astype(compute_dtype)

    x2 = x.reshape(-1, c_in)
    n = x2.shape[0]
    in_itemsize = jnp.dtype(x2.dtype).itemsize
    out_itemsize = jnp.dtype(orig_dtype).itemsize

    vmem_cap = _vmem_capacity_bytes()
    vmem_budget = int(vmem_cap * 0.70)                 # generation-sized tile budget

    bn, fp = _pick_block_rows(n, c_in, hidden, in_itemsize, out_itemsize,
                              vmem_budget, target=block_rows)
    grid = (_cdiv(n, bn),)

    # footprint already includes double-buffering -> limit = fp + ~25% headroom,
    # floored at the 32 MiB default scope and capped at 75% of physical VMEM.
    vmem_limit = int(min(max(int(fp * 1.25), 32 * 2**20), int(vmem_cap * 0.75)))

    cost = pl.CostEstimate(
        flops=4 * n * c_in * hidden,
        transcendentals=0,
        bytes_accessed=(n * c_in * (in_itemsize + out_itemsize)
                        + 2 * c_in * hidden * in_itemsize),
    )

    out = pl.pallas_call(
        _adapter_kernel,
        out_shape=jax.ShapeDtypeStruct((n, c_in), orig_dtype),
        grid_spec=pltpu.PrefetchScalarGridSpec(
            num_scalar_prefetch=0,
            grid=grid,
            in_specs=[
                pl.BlockSpec((bn, c_in), lambda i: (i, 0)),
                pl.BlockSpec((hidden, c_in), lambda i: (0, 0)),
                pl.BlockSpec((c_in, hidden), lambda i: (0, 0)),
            ],
            out_specs=pl.BlockSpec((bn, c_in), lambda i: (i, 0)),
        ),
        compiler_params=pltpu.CompilerParams(
            dimension_semantics=("parallel",),
            vmem_limit_bytes=vmem_limit,
        ),
        cost_estimate=cost,
    )(x2, w1, w2)

    return out.reshape(*lead, c_in)


# ----------------------------------------------------------------------------
# Self-test
# ----------------------------------------------------------------------------
def _make_params(key, c_in, reduction, dtype=jnp.float32):
    hidden = c_in // reduction
    k1, k2 = jax.random.split(key)
    w1 = jax.random.uniform(k1, (hidden, c_in), dtype=jnp.float32,
                            minval=-1.0, maxval=1.0) / jnp.sqrt(c_in)
    w2 = jax.random.uniform(k2, (c_in, hidden), dtype=jnp.float32,
                            minval=-1.0, maxval=1.0) / jnp.sqrt(hidden)
    return w1.astype(dtype), w2.astype(dtype)


def _reference(x, w1, w2):
    x = x.astype(jnp.float32)
    w1 = w1.astype(jnp.float32)
    w2 = w2.astype(jnp.float32)
    return jnp.maximum(jnp.maximum(x @ w1.T, 0.0) @ w2.T, 0.0)


if __name__ == "__main__":
    key = jax.random.PRNGKey(0)
    kx1, kw1, kx2, kw2, kx3, kw3 = jax.random.split(key, 6)
    fwd = jax.jit(adapter_forward, static_argnames=("block_rows", "compute_dtype"))

    # Case 1: small channel dim (c_in=32, reduction=2).  512 rows -> 2 tiles of
    # 256; row-major path with masked (vst.msk) output stores, no HBM transposes.
    C1, R1 = 32, 2
    x1 = jax.random.normal(kx1, (4, 128, C1), dtype=jnp.float32)
    w1a, w2a = _make_params(kw1, C1, R1)
    out1 = jax.block_until_ready(fwd(x1, w1a, w2a))
    ref1 = _reference(x1, w1a, w2a)
    assert out1.shape == x1.shape and out1.dtype == x1.dtype
    assert jnp.allclose(out1, ref1, atol=1e-5, rtol=1e-5), "mismatch (c_in=32)"

    # Case 2: c_in multiple of 128 with a non-tile-sized row count: remainder
    # balancing gives 2 tiles of 160 (no wasted tail work).
    C2, R2 = 128, 4
    x2 = jax.random.normal(kx2, (320, C2), dtype=jnp.float32)
    w1b, w2b = _make_params(kw2, C2, R2)
    out2 = jax.block_until_ready(fwd(x2, w1b, w2b))
    ref2 = _reference(x2, w1b, w2b)
    assert out2.shape == x2.shape and out2.dtype == x2.dtype
    assert jnp.allclose(out2, ref2, atol=1e-5, rtol=1e-5), "mismatch (c_in=128)"

    # Case 3: bf16 activations streamed in bf16 (f32 accumulation in-kernel);
    # output dtype follows the caller's input dtype.
    C3, R3 = 128, 2
    x3 = jax.random.normal(kx3, (2, 256, C3), dtype=jnp.float32).astype(jnp.bfloat16)
    w1c, w2c = _make_params(kw3, C3, R3, dtype=jnp.bfloat16)
    out3 = jax.block_until_ready(fwd(x3, w1c, w2c, compute_dtype=jnp.bfloat16))
    ref3 = _reference(x3, w1c, w2c)
    assert out3.shape == x3.shape and out3.dtype == jnp.bfloat16
    assert jnp.allclose(out3.astype(jnp.float32), ref3, atol=2e-2, rtol=2e-2), \
        "mismatch (bf16 streaming)"

    print("KERNEL_OK")
</pallas_src>

<mosaic_0001>
module attributes {stable_mosaic.version = 11 : i64} {
  func.func @_adapter_kernel(%arg0: i32, %arg1: memref<256x32xf32, #tpu.memory_space<vmem>>, %arg2: memref<16x32xf32, #tpu.memory_space<vmem>>, %arg3: memref<32x16xf32, #tpu.memory_space<vmem>>, %arg4: memref<256x32xf32, #tpu.memory_space<vmem>>) attributes {dimension_semantics = [#tpu.dimension_semantics<parallel>], iteration_bounds = array<i64: 2>, scalar_prefetch = 0 : i64, scratch_operands = 0 : i64, tpu.core_type = #tpu.core_type<tc>, window_params = [{transform_indices = @transform_0, window_bounds = array<i64: 256, 32>}, {pipeline_mode = #tpu.pipeline_mode<synchronous>, transform_indices = @transform_1, window_bounds = array<i64: 16, 32>}, {pipeline_mode = #tpu.pipeline_mode<synchronous>, transform_indices = @transform_2, window_bounds = array<i64: 32, 16>}, {transform_indices = @transform_3, window_bounds = array<i64: 256, 32>}]} {
    %c0 = arith.constant 0 : index
    %c0_0 = arith.constant 0 : index
    %0 = vector.load %arg1[%c0, %c0_0] : memref<256x32xf32, #tpu.memory_space<vmem>>, vector<256x32xf32>
    %c0_1 = arith.constant 0 : index
    %c0_2 = arith.constant 0 : index
    %1 = vector.load %arg2[%c0_1, %c0_2] : memref<16x32xf32, #tpu.memory_space<vmem>>, vector<16x32xf32>
    %cst = arith.constant dense<0.000000e+00> : vector<256x16xf32>
    %2 = tpu.matmul %0, %1, %cst {dimension_numbers = #tpu.dot_dimension_numbers<[1], [1], [0], [0], [0, 0, 1, 0], [], []>} : vector<256x32xf32>, vector<16x32xf32>, vector<256x16xf32> -> vector<256x16xf32>
    %cst_3 = arith.constant 0.000000e+00 : f32
    %3 = vector.broadcast %cst_3 : f32 to vector<256x16xf32>
    %4 = arith.maximumf %2, %3 : vector<256x16xf32>
    %c0_4 = arith.constant 0 : index
    %c0_5 = arith.constant 0 : index
    %5 = vector.load %arg3[%c0_4, %c0_5] : memref<32x16xf32, #tpu.memory_space<vmem>>, vector<32x16xf32>
    %cst_6 = arith.constant dense<0.000000e+00> : vector<256x32xf32>
    %6 = tpu.matmul %4, %5, %cst_6 {dimension_numbers = #tpu.dot_dimension_numbers<[1], [1], [0], [0], [0, 0, 1, 0], [], []>} : vector<256x16xf32>, vector<32x16xf32>, vector<256x32xf32> -> vector<256x32xf32>
    %cst_7 = arith.constant 0.000000e+00 : f32
    %7 = vector.broadcast %cst_7 : f32 to vector<256x32xf32>
    %8 = arith.maximumf %6, %7 : vector<256x32xf32>
    %c0_8 = arith.constant 0 : index
    %c0_9 = arith.constant 0 : index
    %9 = vector.load %arg4[%c0_8, %c0_9] : memref<256x32xf32, #tpu.memory_space<vmem>>, vector<256x32xf32>
    tpu.vector_store %arg4[%c0_8, %c0_9], %8 {strides = array<i32>} : memref<256x32xf32, #tpu.memory_space<vmem>>, vector<256x32xf32>,
    return
  }
  func.func @transform_0(%arg0: i32) -> (i32, i32) {
    %c0_i32 = arith.constant 0 : i32
    %c0_i32_0 = arith.constant 0 : i32
    return %arg0, %c0_i32 : i32, i32
  }
  func.func @transform_1(%arg0: i32) -> (i32, i32) {
    %c0_i32 = arith.constant 0 : i32
    %c0_i32_0 = arith.constant 0 : i32
    %c0_i32_1 = arith.constant 0 : i32
    return %c0_i32, %c0_i32_0 : i32, i32
  }
  func.func @transform_2(%arg0: i32) -> (i32, i32) {
    %c0_i32 = arith.constant 0 : i32
    %c0_i32_0 = arith.constant 0 : i32
    %c0_i32_1 = arith.constant 0 : i32
    return %c0_i32, %c0_i32_0 : i32, i32
  }
  func.func @transform_3(%arg0: i32) -> (i32, i32) {
    %c0_i32 = arith.constant 0 : i32
    %c0_i32_0 = arith.constant 0 : i32
    return %arg0, %c0_i32 : i32, i32
  }
}

</mosaic_0001>

<llo_original>
// kernel: adapter_forward.1
$region0: #{adapter_forward.1}
  #allocation0 [shape = 'u32[]', space=smem, size = 0x4, offset = 0x4, fixed_abs, tag = 'smem constant byte address 0x4 - core index']
  #allocation1 [shape = 'u32[144,128]{1,0:T(1,128)}', space=vmem, size = 0x12000, scoped, tag = 'internal scratch']
  %s0 = inlined_call_operand.vmem [shape: f32[512,32], index: 0, kind: input, shape index: {}]
  %s1 = inlined_call_operand.vmem [shape: f32[16,32], index: 1, kind: input, shape index: {}]
  %s2 = inlined_call_operand.vmem [shape: f32[32,16], index: 2, kind: input, shape index: {}]
  %s3 = inlined_call_operand.vmem [shape: f32[512,32], index: 3, kind: output, shape index: {}]
  %s4 = sld [smem:[#allocation0]]
  $region45: #{adapter_forward.1} parent=0
    _
  %s6 = ssub.s32 1, %s4
  %s7 = scalar_select 0, %s6, %s4
  loop: start=0, step=1, limit=4
  $region2: #{adapter_forward.1} parent=0 // loop_pre_header
    _
  $region3: #{adapter_forward.1} parent=0 // loop_header
    %s9 = sphi 0, %s13
    %p10 = scmp.ge.s32.totalorder %s9, 4
    %s19 = sphi 0, %s21
    %s22 = sphi 0, %s19
    %s23 = sphi 0, %s22
    %s39 = sphi 0, %s23
    %s43 = sphi 0, %s43
    %s45 = sphi 0, %s43
    %s46 = sphi 0, %s45
    %s60 = sphi 0, %s46
    %s64 = sphi 0, %s64
    %s66 = sphi 0, %s64
    %s67 = sphi 0, %s66
    %s81 = sphi 0, %s67
    %s87 = sphi 0, %s89
    %s90 = sphi 0, %s87
    %s91 = sphi 0, %s90
    %s107 = sphi 0, %s91
  $region4: #{adapter_forward.1} parent=0 // loop_header_branch
    %12 = sbr.rel (%p10) target = $region8
  $region5: #{adapter_forward.1} parent=0 // loop_body
    %s14 = ssub.s32 %s9, 1
    %s15 = ssub.s32 %s9, 2
    %s16 = sadd.s32 %s9, 1
    %s17 = ssub.s32 %s9, %s16
    %p18 = scmp.eq.s32.totalorder %s17, 0
    %s20 = sadd.s32 %s19, 1
    %s21 = scalar_select %p18, %s19, %s20
    %p24 = pneg %p18
    %p25 = scmp.eq.s32.totalorder %s9, 1
    %p26 = por %p24, %p25
    %p27 = scmp.ne.s32.totalorder %s19, %s22
    %p28 = scmp.eq.s32.totalorder %s9, 0
    %p29 = por %p27, %p28
    %p30 = scmp.ne.s32.totalorder %s19, %s22
    %p31 = scmp.eq.s32.totalorder %s14, 1
    %p32 = por %p30, %p31
    %p33 = scmp.ne.s32.totalorder %s22, %s23
    %p34 = scmp.eq.s32.totalorder %s14, 0
    %p35 = por %p33, %p34
    %p36 = scmp.ne.s32.totalorder %s22, %s23
    %p37 = scmp.eq.s32.totalorder %s15, 1
    %p38 = por %p36, %p37
    %p40 = scmp.ne.s32.totalorder %s23, %s39
    %p41 = scmp.eq.s32.totalorder %s15, 0
    %p42 = por %p40, %p41
    %s44 = sadd.s32 %s43, 1
    %p47 = scmp.eq.s32.totalorder %s9, 1
    %p48 = scmp.ne.s32.totalorder %s43, %s45
    %p49 = scmp.eq.s32.totalorder %s9, 0
    %p50 = por %p48, %p49
    %p51 = scmp.ne.s32.totalorder %s43, %s45
    %p52 = scmp.eq.s32.totalorder %s14, 1
    %p53 = por %p51, %p52
    %p54 = scmp.ne.s32.totalorder %s45, %s46
    %p55 = scmp.eq.s32.totalorder %s14, 0
    %p56 = por %p54, %p55
    %p57 = scmp.ne.s32.totalorder %s45, %s46
    %p58 = scmp.eq.s32.totalorder %s15, 1
    %p59 = por %p57, %p58
    %p61 = scmp.ne.s32.totalorder %s46, %s60
    %p62 = scmp.eq.s32.totalorder %s15, 0
    %p63 = por %p61, %p62
    %s65 = sadd.s32 %s64, 1
    %p68 = scmp.eq.s32.totalorder %s9, 1
    %p69 = scmp.ne.s32.totalorder %s64, %s66
    %p70 = scmp.eq.s32.totalorder %s9, 0
    %p71 = por %p69, %p70
    %p72 = scmp.ne.s32.totalorder %s64, %s66
    %p73 = scmp.eq.s32.totalorder %s14, 1
    %p74 = por %p72, %p73
    %p75 = scmp.ne.s32.totalorder %s66, %s67
    %p76 = scmp.eq.s32.totalorder %s14, 0
    %p77 = por %p75, %p76
    %p78 = scmp.ne.s32.totalorder %s66, %s67
    %p79 = scmp.eq.s32.totalorder %s15, 1
    %p80 = por %p78, %p79
    %p82 = scmp.ne.s32.totalorder %s67, %s81
    %p83 = scmp.eq.s32.totalorder %s15, 0
    %p84 = por %p82, %p83
    %s85 = ssub.s32 %s9, %s16
    %p86 = scmp.eq.s32.totalorder %s85, 0
    %s88 = sadd.s32 %s87, 1
    %s89 = scalar_select %p86, %s87, %s88
    %p92 = pneg %p86
    %p93 = scmp.eq.s32.totalorder %s9, 1
    %p94 = por %p92, %p93
    %p95 = scmp.ne.s32.totalorder %s87, %s90
    %p96 = scmp.eq.s32.totalorder %s9, 0
    %p97 = por %p95, %p96
    %p98 = scmp.ne.s32.totalorder %s87, %s90
    %p99 = scmp.eq.s32.totalorder %s14, 1
    %p100 = por %p98, %p99
    %p101 = scmp.ne.s32.totalorder %s90, %s91
    %p102 = scmp.eq.s32.totalorder %s14, 0
    %p103 = por %p101, %p102
    %p104 = scmp.ne.s32.totalorder %s90, %s91
    %p105 = scmp.eq.s32.totalorder %s15, 1
    %p106 = por %p104, %p105
    %p108 = scmp.ne.s32.totalorder %s91, %s107
    %p109 = scmp.eq.s32.totalorder %s15, 0
    %p110 = por %p108, %p109
    %p111 = scmp.le.s32.totalorder 1, %s9
    %p112 = scmp.lt.s32.totalorder %s9, 3
    %p113 = pnand %p111, %p112
    %p114 = pneg %p113
    // Predicated region
    $region9: #{adapter_forward.1} parent=5 // pred_check
      _
    $region10: #{adapter_forward.1} parent=5 // pred_check_branch
      %116 = sbr.rel (%p113) target = $region12
    $region11: #{adapter_forward.1} parent=5 // pred_region
      %s117 = ssub.s32 %s9, 1
      // Predicated region
      $region13: #{adapter_forward.1} parent=11 // pred_check
        %p118 = pneg %p56
      $region14: #{adapter_forward.1} parent=11 // pred_check_branch
        %120 = sbr.rel (%p118) target = $region16
      $region15: #{adapter_forward.1} parent=11 // pred_region
        _
      $region16: #{adapter_forward.1} parent=11 // pred_fallthru
        _
      // Predicated region
      $region17: #{adapter_forward.1} parent=11 // pred_check
        %p121 = pneg %p77
      $region18: #{adapter_forward.1} parent=11 // pred_check_branch
        %123 = sbr.rel (%p121) target = $region20
      $region19: #{adapter_forward.1} parent=11 // pred_region
        _
      $region20: #{adapter_forward.1} parent=11 // pred_fallthru
        _
    $region12: #{adapter_forward.1} parent=5 // pred_fallthru
      _
    %p124 = scmp.lt.s32.totalorder %s9, 2
    // Predicated region
    $region21: #{adapter_forward.1} parent=5 // pred_check
      %p125 = pneg %p124
    $region22: #{adapter_forward.1} parent=5 // pred_check_branch
      %127 = sbr.rel (%p125) target = $region24
    $region23: #{adapter_forward.1} parent=5 // pred_region
      // Predicated region
      $region25: #{adapter_forward.1} parent=23 // pred_check
        %p128 = pneg %p29
      $region26: #{adapter_forward.1} parent=23 // pred_check_branch
        %130 = sbr.rel (%p128) target = $region28
      $region27: #{adapter_forward.1} parent=23 // pred_region
        %s131 = smul.u32 32, %s9
        %p132 = scmp.lt.s32.totalorder %s131, 63
        %s133 = scalar_select %p132, %s131, 63
        %s134 = smul.addr %s133, 8
        %s135 = scalar_lea.vmem %s0, %s134
        %s136 = smul.u32 32, %s9
      $region28: #{adapter_forward.1} parent=23 // pred_fallthru
        _
    $region24: #{adapter_forward.1} parent=5 // pred_fallthru
      _
    %p137 = scmp.le.s32.totalorder 1, %s9
    %p138 = scmp.lt.s32.totalorder %s9, 3
    %p139 = pnand %p137, %p138
    %p140 = pneg %p139
    // Predicated region
    $region29: #{adapter_forward.1} parent=5 // pred_check
      _
    $region30: #{adapter_forward.1} parent=5 // pred_check_branch
      %142 = sbr.rel (%p139) target = $region32
    $region31: #{adapter_forward.1} parent=5 // pred_region
      %s143 = ssub.s32 %s9, 1
      %s144 = smul.u32 32, %s14
      %p145 = scmp.lt.s32.totalorder %s144, 63
      %s146 = scalar_select %p145, %s144, 63
      %s147 = smul.addr %s146, 8
      %s148 = scalar_lea.vmem %s0, %s147
      %p149 = pneg %p35
      %p150 = pneg %p32
      %p151 = pneg %p56
      %p152 = pneg %p53
      %p153 = pneg %p77
      %p154 = pneg %p74
      %p155 = pneg %p103
      %p156 = pneg %p100
      %s157 = smul.u32 32, %s14
      %p158 = scmp.lt.s32.totalorder %s157, 63
      %s159 = scalar_select %p158, %s157, 63
      %s160 = smul.addr %s159, 8
      %s161 = scalar_lea.vmem %s3, %s160
      %s162 = smul.u32 32, %s14
      %p163 = scmp.lt.s32.totalorder %s162, 63
      %s164 = scalar_select %p163, %s162, 63
      %s165 = smul.addr %s164, 8
      %s166 = scalar_lea.vmem %s0, %s165
      %s167 = smul.u32 32, %s14
      %s168 = smul.u32 32, %s14
      %p169 = scmp.lt.s32.totalorder %s168, 63
      %s170 = scalar_select %p169, %s168, 63
      %s171 = smul.addr %s170, 8
      %s172 = scalar_lea.vmem %s3, %s171
      %s173 = smul.u32 32, %s14
      %v174 = vld [vmem:[%s166] sm:$0xff]
      %v175 = vld [vmem:[%s166 + $0x8] sm:$0xff]
      %v176 = vld [vmem:[%s166 + $0x10] sm:$0xff]
      %v177 = vld [vmem:[%s166 + $0x18] sm:$0xff]
      %v178 = vld [vmem:[%s166 + $0x20] sm:$0xff]
      %v179 = vld [vmem:[%s166 + $0x28] sm:$0xff]
      %v180 = vld [vmem:[%s166 + $0x30] sm:$0xff]
      %v181 = vld [vmem:[%s166 + $0x38] sm:$0xff]
      %v182 = vld [vmem:[%s166 + $0x40] sm:$0xff]
      %v183 = vld [vmem:[%s166 + $0x48] sm:$0xff]
      %v184 = vld [vmem:[%s166 + $0x50] sm:$0xff]
      %v185 = vld [vmem:[%s166 + $0x58] sm:$0xff]
      %v186 = vld [vmem:[%s166 + $0x60] sm:$0xff]
      %v187 = vld [vmem:[%s166 + $0x68] sm:$0xff]
      %v188 = vld [vmem:[%s166 + $0x70] sm:$0xff]
      %v189 = vld [vmem:[%s166 + $0x78] sm:$0xff]
      %v190 = vld [vmem:[%s166 + $0x80] sm:$0xff]
      %v191 = vld [vmem:[%s166 + $0x88] sm:$0xff]
      %v192 = vld [vmem:[%s166 + $0x90] sm:$0xff]
      %v193 = vld [vmem:[%s166 + $0x98] sm:$0xff]
      %v194 = vld [vmem:[%s166 + $0xa0] sm:$0xff]
      %v195 = vld [vmem:[%s166 + $0xa8] sm:$0xff]
      %v196 = vld [vmem:[%s166 + $0xb0] sm:$0xff]
      %v197 = vld [vmem:[%s166 + $0xb8] sm:$0xff]
      %v198 = vld [vmem:[%s166 + $0xc0] sm:$0xff]
      %v199 = vld [vmem:[%s166 + $0xc8] sm:$0xff]
      %v200 = vld [vmem:[%s166 + $0xd0] sm:$0xff]
      %v201 = vld [vmem:[%s166 + $0xd8] sm:$0xff]
      %v202 = vld [vmem:[%s166 + $0xe0] sm:$0xff]
      %v203 = vld [vmem:[%s166 + $0xe8] sm:$0xff]
      %v204 = vld [vmem:[%s166 + $0xf0] sm:$0xff]
      %v205 = vld [vmem:[%s166 + $0xf8] sm:$0xff]
      %v206 = vld [vmem:[%s1] sm:$0xff]
      %v207 = vld [vmem:[%s1 + $0x8] sm:$0xff]
      %vm208 = vcmask 261120
      %v210 = vsel %vm208, %v174, 0
      %v213 = vsel %vm208, %v175, 0
      %v216 = vsel %vm208, %v176, 0
      %v219 = vsel %vm208, %v177, 0
      %v222 = vsel %vm208, %v178, 0
      %v225 = vsel %vm208, %v179, 0
      %v228 = vsel %vm208, %v180, 0
      %v231 = vsel %vm208, %v181, 0
      %v234 = vsel %vm208, %v182, 0
      %v237 = vsel %vm208, %v183, 0
      %v240 = vsel %vm208, %v184, 0
      %v243 = vsel %vm208, %v185, 0
      %v246 = vsel %vm208, %v186, 0
      %v249 = vsel %vm208, %v187, 0
      %v252 = vsel %vm208, %v188, 0
      %v255 = vsel %vm208, %v189, 0
      %v258 = vsel %vm208, %v190, 0
      %v261 = vsel %vm208, %v191, 0
      %v264 = vsel %vm208, %v192, 0
      %v267 = vsel %vm208, %v193, 0
      %v270 = vsel %vm208, %v194, 0
      %v273 = vsel %vm208, %v195, 0
      %v276 = vsel %vm208, %v196, 0
      %v279 = vsel %vm208, %v197, 0
      %v282 = vsel %vm208, %v198, 0
      %v285 = vsel %vm208, %v199, 0
      %v288 = vsel %vm208, %v200, 0
      %v291 = vsel %vm208, %v201, 0
      %v294 = vsel %vm208, %v202, 0
      %v297 = vsel %vm208, %v203, 0
      %v300 = vsel %vm208, %v204, 0
      %v303 = vsel %vm208, %v205, 0
      %v306 = vsel %vm208, %v206, 0
      %v309 = vsel %vm208, %v207, 0
      %311 = vmatprep.subr.mxu0 0.0
      %312 = vmatpush1.xpose.msra.mxu0 %v306
      %313 = vmatprep.subr.mxu0 0.0
      %314 = vmatpush1.xpose.msra.mxu0 %v309
      %315 = vmatprep.subr.mxu0 0.0
      %316 = vmatpush1.xpose.msra.mxu0 0.0
      %317 = vmatprep.subr.mxu0 0.0
      %318 = vmatpush1.xpose.msra.mxu0 0.0
      %319 = vmatprep.subr.mxu0 0.0
      %320 = vmatpush1.xpose.msra.mxu0 0.0
      %321 = vmatprep.subr.mxu0 0.0
      %322 = vmatpush1.xpose.msra.mxu0 0.0
      %323 = vmatprep.subr.mxu0 0.0
      %324 = vmatpush1.xpose.msra.mxu0 0.0
      %325 = vmatprep.subr.mxu0 0.0
      %326 = vmatpush1.xpose.msra.mxu0 0.0
      %327 = vmatprep.subr.mxu0 0.0
      %328 = vmatpush1.xpose.msra.mxu0 0.0
      %329 = vmatprep.subr.mxu0 0.0
      %330 = vmatpush1.xpose.msra.mxu0 0.0
      %331 = vmatprep.subr.mxu0 0.0
      %332 = vmatpush1.xpose.msra.mxu0 0.0
      %333 = vmatprep.subr.mxu0 0.0
      %334 = vmatpush1.xpose.msra.mxu0 0.0
      %335 = vmatprep.subr.mxu0 0.0
      %336 = vmatpush1.xpose.msra.mxu0 0.0
      %337 = vmatprep.subr.mxu0 0.0
      %338 = vmatpush1.xpose.msra.mxu0 0.0
      %339 = vmatprep.subr.mxu0 0.0
      %340 = vmatpush1.xpose.msra.mxu0 0.0
      %341 = vmatprep.subr.mxu0 0.0
      %342 = vmatpush1.xpose.msra.mxu0 0.0
      %343 = vmatprep.subr.mxu0 0.0
      %344 = vmatpush1.xpose.msra.mxu0 0.0
      %345 = vmatprep.subr.mxu0 0.0
      %346 = vmatpush1.xpose.msra.mxu0 0.0
      %347 = vmatprep.subr.mxu0 0.0
      %348 = vmatpush1.xpose.msra.mxu0 0.0
      %349 = vmatprep.subr.mxu0 0.0
      %350 = vmatpush1.xpose.msra.mxu0 0.0
      %351 = vmatprep.subr.mxu0 0.0
      %352 = vmatpush1.xpose.msra.mxu0 0.0
      %353 = vmatprep.subr.mxu0 0.0
      %354 = vmatpush1.xpose.msra.mxu0 0.0
      %355 = vmatprep.subr.mxu0 0.0
      %356 = vmatpush1.xpose.msra.mxu0 0.0
      %357 = vmatprep.subr.mxu0 0.0
      %358 = vmatpush1.xpose.msra.mxu0 0.0
      %359 = vmatprep.subr.mxu0 0.0
      %360 = vmatpush1.xpose.msra.mxu0 0.0
      %361 = vmatprep.subr.mxu0 0.0
      %362 = vmatpush1.xpose.msra.mxu0 0.0
      %363 = vmatprep.subr.mxu0 0.0
      %364 = vmatpush1.xpose.msra.mxu0 0.0
      %365 = vmatprep.subr.mxu0 0.0
      %366 = vmatpush1.xpose.msra.mxu0 0.0
      %367 = vmatprep.subr.mxu0 0.0
      %368 = vmatpush1.xpose.msra.mxu0 0.0
      %369 = vmatprep.subr.mxu0 0.0
      %370 = vmatpush1.xpose.msra.mxu0 0.0
      %371 = vmatprep.subr.mxu0 0.0
      %372 = vmatpush1.xpose.msra.mxu0 0.0
      %373 = vmatprep.subr.mxu0 0.0
      %374 = vmatpush1.xpose.msra.mxu0 0.0
      %375 = vmatprep.mubr.f32.mxu0 0.0
      %376 = vmatmul.mubr.f32.gmra.mrb[0].mxu0 %v210
      %v377 = vpop.f32.mrb[0].mxu0
      %v378 = vadd.f32 0.0, %v377
      %v379 = vpop.f32.mrb[0].mxu0
      %380 = vmatprep.mubr.f32.mxu0 0.0
      %381 = vmatmul.mubr.f32.gmra.mrb[0].mxu0 %v213
      %v382 = vpop.f32.mrb[0].mxu0
      %v383 = vadd.f32 0.0, %v382
      %v384 = vpop.f32.mrb[0].mxu0
      %385 = vmatprep.mubr.f32.mxu0 0.0
      %386 = vmatmul.mubr.f32.gmra.mrb[0].mxu0 %v216
      %v387 = vpop.f32.mrb[0].mxu0
      %v388 = vadd.f32 0.0, %v387
      %v389 = vpop.f32.mrb[0].mxu0
      %390 = vmatprep.mubr.f32.mxu0 0.0
      %391 = vmatmul.mubr.f32.gmra.mrb[0].mxu0 %v219
      %v392 = vpop.f32.mrb[0].mxu0
      %v393 = vadd.f32 0.0, %v392
      %v394 = vpop.f32.mrb[0].mxu0
      %395 = vmatprep.mubr.f32.mxu0 0.0
      %396 = vmatmul.mubr.f32.gmra.mrb[0].mxu0 %v222
      %v397 = vpop.f32.mrb[0].mxu0
      %v398 = vadd.f32 0.0, %v397
      %v399 = vpop.f32.mrb[0].mxu0
      %400 = vmatprep.mubr.f32.mxu0 0.0
      %401 = vmatmul.mubr.f32.gmra.mrb[0].mxu0 %v225
      %v402 = vpop.f32.mrb[0].mxu0
      %v403 = vadd.f32 0.0, %v402
      %v404 = vpop.f32.mrb[0].mxu0
      %405 = vmatprep.mubr.f32.mxu0 0.0
      %406 = vmatmul.mubr.f32.gmra.mrb[0].mxu0 %v228
      %v407 = vpop.f32.mrb[0].mxu0
      %v408 = vadd.f32 0.0, %v407
      %v409 = vpop.f32.mrb[0].mxu0
      %410 = vmatprep.mubr.f32.mxu0 0.0
      %411 = vmatmul.mubr.f32.gmra.mrb[0].mxu0 %v231
      %v412 = vpop.f32.mrb[0].mxu0
      %v413 = vadd.f32 0.0, %v412
      %v414 = vpop.f32.mrb[0].mxu0
      %415 = vmatprep.mubr.f32.mxu0 0.0
      %416 = vmatmul.mubr.f32.gmra.mrb[0].mxu0 %v234
      %v417 = vpop.f32.mrb[0].mxu0
      %v418 = vadd.f32 0.0, %v417
      %v419 = vpop.f32.mrb[0].mxu0
      %420 = vmatprep.mubr.f32.mxu0 0.0
      %421 = vmatmul.mubr.f32.gmra.mrb[0].mxu0 %v237
      %v422 = vpop.f32.mrb[0].mxu0
      %v423 = vadd.f32 0.0, %v422
      %v424 = vpop.f32.mrb[0].mxu0
      %425 = vmatprep.mubr.f32.mxu0 0.0
      %426 = vmatmul.mubr.f32.gmra.mrb[0].mxu0 %v240
      %v427 = vpop.f32.mrb[0].mxu0
      %v428 = vadd.f32 0.0, %v427
      %v429 = vpop.f32.mrb[0].mxu0
      %430 = vmatprep.mubr.f32.mxu0 0.0
      %431 = vmatmul.mubr.f32.gmra.mrb[0].mxu0 %v243
      %v432 = vpop.f32.mrb[0].mxu0
      %v433 = vadd.f32 0.0, %v432
      %v434 = vpop.f32.mrb[0].mxu0
      %435 = vmatprep.mubr.f32.mxu0 0.0
      %436 = vmatmul.mubr.f32.gmra.mrb[0].mxu0 %v246
      %v437 = vpop.f32.mrb[0].mxu0
      %v438 = vadd.f32 0.0, %v437
      %v439 = vpop.f32.mrb[0].mxu0
      %440 = vmatprep.mubr.f32.mxu0 0.0
      %441 = vmatmul.mubr.f32.gmra.mrb[0].mxu0 %v249
      %v442 = vpop.f32.mrb[0].mxu0
      %v443 = vadd.f32 0.0, %v442
      %v444 = vpop.f32.mrb[0].mxu0
      %445 = vmatprep.mubr.f32.mxu0 0.0
      %446 = vmatmul.mubr.f32.gmra.mrb[0].mxu0 %v252
      %v447 = vpop.f32.mrb[0].mxu0
      %v448 = vadd.f32 0.0, %v447
      %v449 = vpop.f32.mrb[0].mxu0
      %450 = vmatprep.mubr.f32.mxu0 0.0
      %451 = vmatmul.mubr.f32.gmra.mrb[0].mxu0 %v255
      %v452 = vpop.f32.mrb[0].mxu0
      %v453 = vadd.f32 0.0, %v452
      %v454 = vpop.f32.mrb[0].mxu0
      %455 = vmatprep.mubr.f32.mxu0 0.0
      %456 = vmatmul.mubr.f32.gmra.mrb[0].mxu0 %v258
      %v457 = vpop.f32.mrb[0].mxu0
      %v458 = vadd.f32 0.0, %v457
      %v459 = vpop.f32.mrb[0].mxu0
      %460 = vmatprep.mubr.f32.mxu0 0.0
      %461 = vmatmul.mubr.f32.gmra.mrb[0].mxu0 %v261
      %v462 = vpop.f32.mrb[0].mxu0
      %v463 = vadd.f32 0.0, %v462
      %v464 = vpop.f32.mrb[0].mxu0
      %465 = vmatprep.mubr.f32.mxu0 0.0
      %466 = vmatmul.mubr.f32.gmra.mrb[0].mxu0 %v264
      %v467 = vpop.f32.mrb[0].mxu0
      %v468 = vadd.f32 0.0, %v467
      %v469 = vpop.f32.mrb[0].mxu0
      %470 = vmatprep.mubr.f32.mxu0 0.0
      %471 = vmatmul.mubr.f32.gmra.mrb[0].mxu0 %v267
      %v472 = vpop.f32.mrb[0].mxu0
      %v473 = vadd.f32 0.0, %v472
      %v474 = vpop.f32.mrb[0].mxu0
      %475 = vmatprep.mubr.f32.mxu0 0.0
      %476 = vmatmul.mubr.f32.gmra.mrb[0].mxu0 %v270
      %v477 = vpop.f32.mrb[0].mxu0
      %v478 = vadd.f32 0.0, %v477
      %v479 = vpop.f32.mrb[0].mxu0
      %480 = vmatprep.mubr.f32.mxu0 0.0
      %481 = vmatmul.mubr.f32.gmra.mrb[0].mxu0 %v273
      %v482 = vpop.f32.mrb[0].mxu0
      %v483 = vadd.f32 0.0, %v482
      %v484 = vpop.f32.mrb[0].mxu0
      %485 = vmatprep.mubr.f32.mxu0 0.0
      %486 = vmatmul.mubr.f32.gmra.mrb[0].mxu0 %v276
      %v487 = vpop.f32.mrb[0].mxu0
      %v488 = vadd.f32 0.0, %v487
      %v489 = vpop.f32.mrb[0].mxu0
      %490 = vmatprep.mubr.f32.mxu0 0.0
      %491 = vmatmul.mubr.f32.gmra.mrb[0].mxu0 %v279
      %v492 = vpop.f32.mrb[0].mxu0
      %v493 = vadd.f32 0.0, %v492
      %v494 = vpop.f32.mrb[0].mxu0
      %495 = vmatprep.mubr.f32.mxu0 0.0
      %496 = vmatmul.mubr.f32.gmra.mrb[0].mxu0 %v282
      %v497 = vpop.f32.mrb[0].mxu0
      %v498 = vadd.f32 0.0, %v497
      %v499 = vpop.f32.mrb[0].mxu0
      %500 = vmatprep.mubr.f32.mxu0 0.0
      %501 = vmatmul.mubr.f32.gmra.mrb[0].mxu0 %v285
      %v502 = vpop.f32.mrb[0].mxu0
      %v503 = vadd.f32 0.0, %v502
      %v504 = vpop.f32.mrb[0].mxu0
      %505 = vmatprep.mubr.f32.mxu0 0.0
      %506 = vmatmul.mubr.f32.gmra.mrb[0].mxu0 %v288
      %v507 = vpop.f32.mrb[0].mxu0
      %v508 = vadd.f32 0.0, %v507
      %v509 = vpop.f32.mrb[0].mxu0
      %510 = vmatprep.mubr.f32.mxu0 0.0
      %511 = vmatmul.mubr.f32.gmra.mrb[0].mxu0 %v291
      %v512 = vpop.f32.mrb[0].mxu0
      %v513 = vadd.f32 0.0, %v512
      %v514 = vpop.f32.mrb[0].mxu0
      %515 = vmatprep.mubr.f32.mxu0 0.0
      %516 = vmatmul.mubr.f32.gmra.mrb[0].mxu0 %v294
      %v517 = vpop.f32.mrb[0].mxu0
      %v518 = vadd.f32 0.0, %v517
      %v519 = vpop.f32.mrb[0].mxu0
      %520 = vmatprep.mubr.f32.mxu0 0.0
      %521 = vmatmul.mubr.f32.gmra.mrb[0].mxu0 %v297
      %v522 = vpop.f32.mrb[0].mxu0
      %v523 = vadd.f32 0.0, %v522
      %v524 = vpop.f32.mrb[0].mxu0
      %525 = vmatprep.mubr.f32.mxu0 0.0
      %526 = vmatmul.mubr.f32.gmra.mrb[0].mxu0 %v300
      %v527 = vpop.f32.mrb[0].mxu0
      %v528 = vadd.f32 0.0, %v527
      %v529 = vpop.f32.mrb[0].mxu0
      %530 = vmatprep.mubr.f32.mxu0 0.0
      %531 = vmatmul.mubr.f32.gmra.mrb[0].mxu0 %v303
      %v532 = vpop.f32.mrb[0].mxu0
      %v533 = vadd.f32 0.0, %v532
      %v534 = vpop.f32.mrb[0].mxu0
      %535 = vdwg.mxu0
      %v536 = vmax.f32 %v378, 0.0
      %v537 = vmax.f32 %v383, 0.0
      %v538 = vmax.f32 %v388, 0.0
      %v539 = vmax.f32 %v393, 0.0
      %v540 = vmax.f32 %v398, 0.0
      %v541 = vmax.f32 %v403, 0.0
      %v542 = vmax.f32 %v408, 0.0
      %v543 = vmax.f32 %v413, 0.0
      %v544 = vmax.f32 %v418, 0.0
      %v545 = vmax.f32 %v423, 0.0
      %v546 = vmax.f32 %v428, 0.0
      %v547 = vmax.f32 %v433, 0.0
      %v548 = vmax.f32 %v438, 0.0
      %v549 = vmax.f32 %v443, 0.0
      %v550 = vmax.f32 %v448, 0.0
      %v551 = vmax.f32 %v453, 0.0
      %v552 = vmax.f32 %v458, 0.0
      %v553 = vmax.f32 %v463, 0.0
      %v554 = vmax.f32 %v468, 0.0
      %v555 = vmax.f32 %v473, 0.0
      %v556 = vmax.f32 %v478, 0.0
      %v557 = vmax.f32 %v483, 0.0
      %v558 = vmax.f32 %v488, 0.0
      %v559 = vmax.f32 %v493, 0.0
      %v560 = vmax.f32 %v498, 0.0
      %v561 = vmax.f32 %v503, 0.0
      %v562 = vmax.f32 %v508, 0.0
      %v563 = vmax.f32 %v513, 0.0
      %v564 = vmax.f32 %v518, 0.0
      %v565 = vmax.f32 %v523, 0.0
      %v566 = vmax.f32 %v528, 0.0
      %v567 = vmax.f32 %v533, 0.0
      %v568 = vld [vmem:[%s2] sm:$0xff]
      %v569 = vld [vmem:[%s2 + $0x8] sm:$0xff]
      %v570 = vld [vmem:[%s2 + $0x10] sm:$0xff]
      %v571 = vld [vmem:[%s2 + $0x18] sm:$0xff]
      %vm572 = vcmask 130048
      %v574 = vsel %vm572, %v536, 0
      %v577 = vsel %vm572, %v537, 0
      %v580 = vsel %vm572, %v538, 0
      %v583 = vsel %vm572, %v539, 0
      %v586 = vsel %vm572, %v540, 0
      %v589 = vsel %vm572, %v541, 0
      %v592 = vsel %vm572, %v542, 0
      %v595 = vsel %vm572, %v543, 0
      %v598 = vsel %vm572, %v544, 0
      %v601 = vsel %vm572, %v545, 0
      %v604 = vsel %vm572, %v546, 0
      %v607 = vsel %vm572, %v547, 0
      %v610 = vsel %vm572, %v548, 0
      %v613 = vsel %vm572, %v549, 0
      %v616 = vsel %vm572, %v550, 0
      %v619 = vsel %vm572, %v551, 0
      %v622 = vsel %vm572, %v552, 0
      %v625 = vsel %vm572, %v553, 0
      %v628 = vsel %vm572, %v554, 0
      %v631 = vsel %vm572, %v555, 0
      %v634 = vsel %vm572, %v556, 0
      %v637 = vsel %vm572, %v557, 0
      %v640 = vsel %vm572, %v558, 0
      %v643 = vsel %vm572, %v559, 0
      %v646 = vsel %vm572, %v560, 0
      %v649 = vsel %vm572, %v561, 0
      %v652 = vsel %vm572, %v562, 0
      %v655 = vsel %vm572, %v563, 0
      %v658 = vsel %vm572, %v564, 0
      %v661 = vsel %vm572, %v565, 0
      %v664 = vsel %vm572, %v566, 0
      %v667 = vsel %vm572, %v567, 0
      %v670 = vsel %vm572, %v568, 0
      %v673 = vsel %vm572, %v569, 0
      %v676 = vsel %vm572, %v570, 0
      %v679 = vsel %vm572, %v571, 0
      %681 = vmatprep.subr.mxu0 0.0
      %682 = vmatpush1.xpose.msra.mxu0 %v670
      %683 = vmatprep.subr.mxu0 0.0
      %684 = vmatpush1.xpose.msra.mxu0 %v673
      %685 = vmatprep.subr.mxu0 0.0
      %686 = vmatpush1.xpose.msra.mxu0 %v676
      %687 = vmatprep.subr.mxu0 0.0
      %688 = vmatpush1.xpose.msra.mxu0 %v679
      %689 = vmatprep.subr.mxu0 0.0
      %690 = vmatpush1.xpose.msra.mxu0 0.0
      %691 = vmatprep.subr.mxu0 0.0
      %692 = vmatpush1.xpose.msra.mxu0 0.0
      %693 = vmatprep.subr.mxu0 0.0
      %694 = vmatpush1.xpose.msra.mxu0 0.0
      %695 = vmatprep.subr.mxu0 0.0
      %696 = vmatpush1.xpose.msra.mxu0 0.0
      %697 = vmatprep.subr.mxu0 0.0
      %698 = vmatpush1.xpose.msra.mxu0 0.0
      %699 = vmatprep.subr.mxu0 0.0
      %700 = vmatpush1.xpose.msra.mxu0 0.0
      %701 = vmatprep.subr.mxu0 0.0
      %702 = vmatpush1.xpose.msra.mxu0 0.0
      %703 = vmatprep.subr.mxu0 0.0
      %704 = vmatpush1.xpose.msra.mxu0 0.0
      %705 = vmatprep.subr.mxu0 0.0
      %706 = vmatpush1.xpose.msra.mxu0 0.0
      %707 = vmatprep.subr.mxu0 0.0
      %708 = vmatpush1.xpose.msra.mxu0 0.0
      %709 = vmatprep.subr.mxu0 0.0
      %710 = vmatpush1.xpose.msra.mxu0 0.0
      %711 = vmatprep.subr.mxu0 0.0
      %712 = vmatpush1.xpose.msra.mxu0 0.0
      %713 = vmatprep.subr.mxu0 0.0
      %714 = vmatpush1.xpose.msra.mxu0 0.0
      %715 = vmatprep.subr.mxu0 0.0
      %716 = vmatpush1.xpose.msra.mxu0 0.0
      %717 = vmatprep.subr.mxu0 0.0
      %718 = vmatpush1.xpose.msra.mxu0 0.0
      %719 = vmatprep.subr.mxu0 0.0
      %720 = vmatpush1.xpose.msra.mxu0 0.0
      %721 = vmatprep.subr.mxu0 0.0
      %722 = vmatpush1.xpose.msra.mxu0 0.0
      %723 = vmatprep.subr.mxu0 0.0
      %724 = vmatpush1.xpose.msra.mxu0 0.0
      %725 = vmatprep.subr.mxu0 0.0
      %726 = vmatpush1.xpose.msra.mxu0 0.0
      %727 = vmatprep.subr.mxu0 0.0
      %728 = vmatpush1.xpose.msra.mxu0 0.0
      %729 = vmatprep.subr.mxu0 0.0
      %730 = vmatpush1.xpose.msra.mxu0 0.0
      %731 = vmatprep.subr.mxu0 0.0
      %732 = vmatpush1.xpose.msra.mxu0 0.0
      %733 = vmatprep.subr.mxu0 0.0
      %734 = vmatpush1.xpose.msra.mxu0 0.0
      %735 = vmatprep.subr.mxu0 0.0
      %736 = vmatpush1.xpose.msra.mxu0 0.0
      %737 = vmatprep.subr.mxu0 0.0
      %738 = vmatpush1.xpose.msra.mxu0 0.0
      %739 = vmatprep.subr.mxu0 0.0
      %740 = vmatpush1.xpose.msra.mxu0 0.0
      %741 = vmatprep.subr.mxu0 0.0
      %742 = vmatpush1.xpose.msra.mxu0 0.0
      %743 = vmatprep.subr.mxu0 0.0
      %744 = vmatpush1.xpose.msra.mxu0 0.0
      %745 = vmatprep.mubr.f32.mxu0 0.0
      %746 = vmatmul.mubr.f32.gmra.mrb[0].mxu0 %v574
      %v747 = vpop.f32.mrb[0].mxu0
      %v748 = vadd.f32 0.0, %v747
      %v749 = vpop.f32.mrb[0].mxu0
      %750 = vmatprep.mubr.f32.mxu0 0.0
      %751 = vmatmul.mubr.f32.gmra.mrb[0].mxu0 %v577
      %v752 = vpop.f32.mrb[0].mxu0
      %v753 = vadd.f32 0.0, %v752
      %v754 = vpop.f32.mrb[0].mxu0
      %755 = vmatprep.mubr.f32.mxu0 0.0
      %756 = vmatmul.mubr.f32.gmra.mrb[0].mxu0 %v580
      %v757 = vpop.f32.mrb[0].mxu0
      %v758 = vadd.f32 0.0, %v757
      %v759 = vpop.f32.mrb[0].mxu0
      %760 = vmatprep.mubr.f32.mxu0 0.0
      %761 = vmatmul.mubr.f32.gmra.mrb[0].mxu0 %v583
      %v762 = vpop.f32.mrb[0].mxu0
      %v763 = vadd.f32 0.0, %v762
      %v764 = vpop.f32.mrb[0].mxu0
      %765 = vmatprep.mubr.f32.mxu0 0.0
      %766 = vmatmul.mubr.f32.gmra.mrb[0].mxu0 %v586
      %v767 = vpop.f32.mrb[0].mxu0
      %v768 = vadd.f32 0.0, %v767
      %v769 = vpop.f32.mrb[0].mxu0
      %770 = vmatprep.mubr.f32.mxu0 0.0
      %771 = vmatmul.mubr.f32.gmra.mrb[0].mxu0 %v589
      %v772 = vpop.f32.mrb[0].mxu0
      %v773 = vadd.f32 0.0, %v772
      %v774 = vpop.f32.mrb[0].mxu0
      %775 = vmatprep.mubr.f32.mxu0 0.0
      %776 = vmatmul.mubr.f32.gmra.mrb[0].mxu0 %v592
      %v777 = vpop.f32.mrb[0].mxu0
      %v778 = vadd.f32 0.0, %v777
      %v779 = vpop.f32.mrb[0].mxu0
      %780 = vmatprep.mubr.f32.mxu0 0.0
      %781 = vmatmul.mubr.f32.gmra.mrb[0].mxu0 %v595
      %v782 = vpop.f32.mrb[0].mxu0
      %v783 = vadd.f32 0.0, %v782
      %v784 = vpop.f32.mrb[0].mxu0
      %785 = vmatprep.mubr.f32.mxu0 0.0
      %786 = vmatmul.mubr.f32.gmra.mrb[0].mxu0 %v598
      %v787 = vpop.f32.mrb[0].mxu0
      %v788 = vadd.f32 0.0, %v787
      %v789 = vpop.f32.mrb[0].mxu0
      %790 = vmatprep.mubr.f32.mxu0 0.0
      %791 = vmatmul.mubr.f32.gmra.mrb[0].mxu0 %v601
      %v792 = vpop.f32.mrb[0].mxu0
      %v793 = vadd.f32 0.0, %v792
      %v794 = vpop.f32.mrb[0].mxu0
      %795 = vmatprep.mubr.f32.mxu0 0.0
      %796 = vmatmul.mubr.f32.gmra.mrb[0].mxu0 %v604
      %v797 = vpop.f32.mrb[0].mxu0
      %v798 = vadd.f32 0.0, %v797
      %v799 = vpop.f32.mrb[0].mxu0
      %800 = vmatprep.mubr.f32.mxu0 0.0
      %801 = vmatmul.mubr.f32.gmra.mrb[0].mxu0 %v607
      %v802 = vpop.f32.mrb[0].mxu0
      %v803 = vadd.f32 0.0, %v802
      %v804 = vpop.f32.mrb[0].mxu0
      %805 = vmatprep.mubr.f32.mxu0 0.0
      %806 = vmatmul.mubr.f32.gmra.mrb[0].mxu0 %v610
      %v807 = vpop.f32.mrb[0].mxu0
      %v808 = vadd.f32 0.0, %v807
      %v809 = vpop.f32.mrb[0].mxu0
      %810 = vmatprep.mubr.f32.mxu0 0.0
      %811 = vmatmul.mubr.f32.gmra.mrb[0].mxu0 %v613
      %v812 = vpop.f32.mrb[0].mxu0
      %v813 = vadd.f32 0.0, %v812
      %v814 = vpop.f32.mrb[0].mxu0
      %815 = vmatprep.mubr.f32.mxu0 0.0
      %816 = vmatmul.mubr.f32.gmra.mrb[0].mxu0 %v616
      %v817 = vpop.f32.mrb[0].mxu0
      %v818 = vadd.f32 0.0, %v817
      %v819 = vpop.f32.mrb[0].mxu0
      %820 = vmatprep.mubr.f32.mxu0 0.0
      %821 = vmatmul.mubr.f32.gmra.mrb[0].mxu0 %v619
      %v822 = vpop.f32.mrb[0].mxu0
      %v823 = vadd.f32 0.0, %v822
      %v824 = vpop.f32.mrb[0].mxu0
      %825 = vmatprep.mubr.f32.mxu0 0.0
      %826 = vmatmul.mubr.f32.gmra.mrb[0].mxu0 %v622
      %v827 = vpop.f32.mrb[0].mxu0
      %v828 = vadd.f32 0.0, %v827
      %v829 = vpop.f32.mrb[0].mxu0
      %830 = vmatprep.mubr.f32.mxu0 0.0
      %831 = vmatmul.mubr.f32.gmra.mrb[0].mxu0 %v625
      %v832 = vpop.f32.mrb[0].mxu0
      %v833 = vadd.f32 0.0, %v832
      %v834 = vpop.f32.mrb[0].mxu0
      %835 = vmatprep.mubr.f32.mxu0 0.0
      %836 = vmatmul.mubr.f32.gmra.mrb[0].mxu0 %v628
      %v837 = vpop.f32.mrb[0].mxu0
      %v838 = vadd.f32 0.0, %v837
      %v839 = vpop.f32.mrb[0].mxu0
      %840 = vmatprep.mubr.f32.mxu0 0.0
      %841 = vmatmul.mubr.f32.gmra.mrb[0].mxu0 %v631
      %v842 = vpop.f32.mrb[0].mxu0
      %v843 = vadd.f32 0.0, %v842
      %v844 = vpop.f32.mrb[0].mxu0
      %845 = vmatprep.mubr.f32.mxu0 0.0
      %846 = vmatmul.mubr.f32.gmra.mrb[0].mxu0 %v634
      %v847 = vpop.f32.mrb[0].mxu0
      %v848 = vadd.f32 0.0, %v847
      %v849 = vpop.f32.mrb[0].mxu0
      %850 = vmatprep.mubr.f32.mxu0 0.0
      %851 = vmatmul.mubr.f32.gmra.mrb[0].mxu0 %v637
      %v852 = vpop.f32.mrb[0].mxu0
      %v853 = vadd.f32 0.0, %v852
      %v854 = vpop.f32.mrb[0].mxu0
      %855 = vmatprep.mubr.f32.mxu0 0.0
      %856 = vmatmul.mubr.f32.gmra.mrb[0].mxu0 %v640
      %v857 = vpop.f32.mrb[0].mxu0
      %v858 = vadd.f32 0.0, %v857
      %v859 = vpop.f32.mrb[0].mxu0
      %860 = vmatprep.mubr.f32.mxu0 0.0
      %861 = vmatmul.mubr.f32.gmra.mrb[0].mxu0 %v643
      %v862 = vpop.f32.mrb[0].mxu0
      %v863 = vadd.f32 0.0, %v862
      %v864 = vpop.f32.mrb[0].mxu0
      %865 = vmatprep.mubr.f32.mxu0 0.0
      %866 = vmatmul.mubr.f32.gmra.mrb[0].mxu0 %v646
      %v867 = vpop.f32.mrb[0].mxu0
      %v868 = vadd.f32 0.0, %v867
      %v869 = vpop.f32.mrb[0].mxu0
      %870 = vmatprep.mubr.f32.mxu0 0.0
      %871 = vmatmul.mubr.f32.gmra.mrb[0].mxu0 %v649
      %v872 = vpop.f32.mrb[0].mxu0
      %v873 = vadd.f32 0.0, %v872
      %v874 = vpop.f32.mrb[0].mxu0
      %875 = vmatprep.mubr.f32.mxu0 0.0
      %876 = vmatmul.mubr.f32.gmra.mrb[0].mxu0 %v652
      %v877 = vpop.f32.mrb[0].mxu0
      %v878 = vadd.f32 0.0, %v877
      %v879 = vpop.f32.mrb[0].mxu0
      %880 = vmatprep.mubr.f32.mxu0 0.0
      %881 = vmatmul.mubr.f32.gmra.mrb[0].mxu0 %v655
      %v882 = vpop.f32.mrb[0].mxu0
      %v883 = vadd.f32 0.0, %v882
      %v884 = vpop.f32.mrb[0].mxu0
      %885 = vmatprep.mubr.f32.mxu0 0.0
      %886 = vmatmul.mubr.f32.gmra.mrb[0].mxu0 %v658
      %v887 = vpop.f32.mrb[0].mxu0
      %v888 = vadd.f32 0.0, %v887
      %v889 = vpop.f32.mrb[0].mxu0
      %890 = vmatprep.mubr.f32.mxu0 0.0
      %891 = vmatmul.mubr.f32.gmra.mrb[0].mxu0 %v661
      %v892 = vpop.f32.mrb[0].mxu0
      %v893 = vadd.f32 0.0, %v892
      %v894 = vpop.f32.mrb[0].mxu0
      %895 = vmatprep.mubr.f32.mxu0 0.0
      %896 = vmatmul.mubr.f32.gmra.mrb[0].mxu0 %v664
      %v897 = vpop.f32.mrb[0].mxu0
      %v898 = vadd.f32 0.0, %v897
      %v899 = vpop.f32.mrb[0].mxu0
      %900 = vmatprep.mubr.f32.mxu0 0.0
      %901 = vmatmul.mubr.f32.gmra.mrb[0].mxu0 %v667
      %v902 = vpop.f32.mrb[0].mxu0
      %v903 = vadd.f32 0.0, %v902
      %v904 = vpop.f32.mrb[0].mxu0
      %905 = vdwg.mxu0
      %v906 = vmax.f32 %v748, 0.0
      %v907 = vmax.f32 %v753, 0.0
      %v908 = vmax.f32 %v758, 0.0
      %v909 = vmax.f32 %v763, 0.0
      %v910 = vmax.f32 %v768, 0.0
      %v911 = vmax.f32 %v773, 0.0
      %v912 = vmax.f32 %v778, 0.0
      %v913 = vmax.f32 %v783, 0.0
      %v914 = vmax.f32 %v788, 0.0
      %v915 = vmax.f32 %v793, 0.0
      %v916 = vmax.f32 %v798, 0.0
      %v917 = vmax.f32 %v803, 0.0
      %v918 = vmax.f32 %v808, 0.0
      %v919 = vmax.f32 %v813, 0.0
      %v920 = vmax.f32 %v818, 0.0
      %v921 = vmax.f32 %v823, 0.0
      %v922 = vmax.f32 %v828, 0.0
      %v923 = vmax.f32 %v833, 0.0
      %v924 = vmax.f32 %v838, 0.0
      %v925 = vmax.f32 %v843, 0.0
      %v926 = vmax.f32 %v848, 0.0
      %v927 = vmax.f32 %v853, 0.0
      %v928 = vmax.f32 %v858, 0.0
      %v929 = vmax.f32 %v863, 0.0
      %v930 = vmax.f32 %v868, 0.0
      %v931 = vmax.f32 %v873, 0.0
      %v932 = vmax.f32 %v878, 0.0
      %v933 = vmax.f32 %v883, 0.0
      %v934 = vmax.f32 %v888, 0.0
      %v935 = vmax.f32 %v893, 0.0
      %v936 = vmax.f32 %v898, 0.0
      %v937 = vmax.f32 %v903, 0.0
      %938 = vst.msk [vmem:[%s172] sm:$0xff] %vm208, %v906
      %939 = vst.msk [vmem:[%s172 + $0x8] sm:$0xff] %vm208, %v907
      %940 = vst.msk [vmem:[%s172 + $0x10] sm:$0xff] %vm208, %v908
      %941 = vst.msk [vmem:[%s172 + $0x18] sm:$0xff] %vm208, %v909
      %942 = vst.msk [vmem:[%s172 + $0x20] sm:$0xff] %vm208, %v910
      %943 = vst.msk [vmem:[%s172 + $0x28] sm:$0xff] %vm208, %v911
      %944 = vst.msk [vmem:[%s172 + $0x30] sm:$0xff] %vm208, %v912
      %945 = vst.msk [vmem:[%s172 + $0x38] sm:$0xff] %vm208, %v913
      %946 = vst.msk [vmem:[%s172 + $0x40] sm:$0xff] %vm208, %v914
      %947 = vst.msk [vmem:[%s172 + $0x48] sm:$0xff] %vm208, %v915
      %948 = vst.msk [vmem:[%s172 + $0x50] sm:$0xff] %vm208, %v916
      %949 = vst.msk [vmem:[%s172 + $0x58] sm:$0xff] %vm208, %v917
      %950 = vst.msk [vmem:[%s172 + $0x60] sm:$0xff] %vm208, %v918
      %951 = vst.msk [vmem:[%s172 + $0x68] sm:$0xff] %vm208, %v919
      %952 = vst.msk [vmem:[%s172 + $0x70] sm:$0xff] %vm208, %v920
      %953 = vst.msk [vmem:[%s172 + $0x78] sm:$0xff] %vm208, %v921
      %954 = vst.msk [vmem:[%s172 + $0x80] sm:$0xff] %vm208, %v922
      %955 = vst.msk [vmem:[%s172 + $0x88] sm:$0xff] %vm208, %v923
      %956 = vst.msk [vmem:[%s172 + $0x90] sm:$0xff] %vm208, %v924
      %957 = vst.msk [vmem:[%s172 + $0x98] sm:$0xff] %vm208, %v925
      %958 = vst.msk [vmem:[%s172 + $0xa0] sm:$0xff] %vm208, %v926
      %959 = vst.msk [vmem:[%s172 + $0xa8] sm:$0xff] %vm208, %v927
      %960 = vst.msk [vmem:[%s172 + $0xb0] sm:$0xff] %vm208, %v928
      %961 = vst.msk [vmem:[%s172 + $0xb8] sm:$0xff] %vm208, %v929
      %962 = vst.msk [vmem:[%s172 + $0xc0] sm:$0xff] %vm208, %v930
      %963 = vst.msk [vmem:[%s172 + $0xc8] sm:$0xff] %vm208, %v931
      %964 = vst.msk [vmem:[%s172 + $0xd0] sm:$0xff] %vm208, %v932
      %965 = vst.msk [vmem:[%s172 + $0xd8] sm:$0xff] %vm208, %v933
      %966 = vst.msk [vmem:[%s172 + $0xe0] sm:$0xff] %vm208, %v934
      %967 = vst.msk [vmem:[%s172 + $0xe8] sm:$0xff] %vm208, %v935
      %968 = vst.msk [vmem:[%s172 + $0xf0] sm:$0xff] %vm208, %v936
      %969 = vst.msk [vmem:[%s172 + $0xf8] sm:$0xff] %vm208, %v937
      %s970 = smul.u32 32, %s14
      %p971 = scmp.lt.s32.totalorder %s970, 63
      %s972 = scalar_select %p971, %s970, 63
      %s973 = smul.addr %s972, 8
      %s974 = scalar_lea.vmem %s3, %s973
      // Predicated region
      $region33: #{adapter_forward.1} parent=31 // pred_check
        %p975 = pneg %p100
      $region34: #{adapter_forward.1} parent=31 // pred_check_branch
        %977 = sbr.rel (%p975) target = $region36
      $region35: #{adapter_forward.1} parent=31 // pred_region
        %s978 = smul.u32 32, %s14
      $region36: #{adapter_forward.1} parent=31 // pred_fallthru
        _
    $region32: #{adapter_forward.1} parent=5 // pred_fallthru
      _
    %p979 = scmp.le.s32.totalorder 2, %s9
    // Predicated region
    $region37: #{adapter_forward.1} parent=5 // pred_check
      %p980 = pneg %p979
    $region38: #{adapter_forward.1} parent=5 // pred_check_branch
      %982 = sbr.rel (%p980) target = $region40
    $region39: #{adapter_forward.1} parent=5 // pred_region
      %s983 = ssub.s32 %s9, 2
      // Predicated region
      $region41: #{adapter_forward.1} parent=39 // pred_check
        %p984 = pneg %p106
      $region42: #{adapter_forward.1} parent=39 // pred_check_branch
        %986 = sbr.rel (%p984) target = $region44
      $region43: #{adapter_forward.1} parent=39 // pred_region
        %s987 = smul.u32 32, %s15
        %p988 = scmp.lt.s32.totalorder %s987, 63
        %s989 = scalar_select %p988, %s987, 63
        %s990 = smul.addr %s989, 8
        %s991 = scalar_lea.vmem %s3, %s990
      $region44: #{adapter_forward.1} parent=39 // pred_fallthru
        _
    $region40: #{adapter_forward.1} parent=5 // pred_fallthru
      _
  $region6: #{adapter_forward.1} parent=0 // loop_footer
    %s13 = sadd.s32 1, %s9
  $region7: #{adapter_forward.1} parent=0 // loop_footer_branch
    %8 = sbr.rel target = $region3
  $region8: #{adapter_forward.1} parent=0 // loop_exit
    _

</llo_original>
